<compile_context>
chip_gen: v6e
topology: v6e:2x2x1
jax: 0.10.0
libtpu: 0.0.40
codegen_flags: <defaults>
</compile_context>

<pallas_src>
import jax
import jax.numpy as jnp
from jax import lax
from jax.experimental import pallas as pl
from jax.experimental.pallas import tpu as pltpu


def _router_kernel(x_ref, w_ref, b_ref, o_ref):
    """One row-tile of the MoD token router.

    x_ref: (tm, D)    token tile, input dtype
    w_ref: (1, D)     router weight in the compute dtype (resident)
    b_ref: (1,)       f32 bias scalar in SMEM
    o_ref: (1, 1, tm) output tile, input dtype, lane-dense
    """
    x = x_ref[...]
    w = w_ref[...]
    if x.dtype != w.dtype:
        # exact-f32 path: upcast x (lossless for bf16/fp16) to match f32 weight.
        x = x.astype(w.dtype)

    # out[0, t] = sum_d w[0, d] * x[t, d]  -> (1, tm), f32 accumulation on MXU.
    # Contracting both operands on their last dim keeps the result lane-dense.
    acc = lax.dot_general(
        w, x,
        dimension_numbers=(((1,), (1,)), ((), ())),
        preferred_element_type=jnp.float32,
    )
    acc = acc + b_ref[0]
    o_ref[...] = acc.astype(o_ref.dtype).reshape(o_ref.shape)


def _round_up(n, m):
    return ((n + m - 1) // m) * m


def _pick_tile(M, D, x_itemsize, exact_f32, budget_bytes):
    """Largest row tile (mult. of 8/128) whose pipelined buffers fit budget."""
    per_row = 2 * D * x_itemsize                 # 2 double-buffered input tiles
    if exact_f32 and x_itemsize < 4:
        per_row += 4 * D                         # in-kernel f32 upcast copy
    tm = budget_bytes // max(per_row, 1)
    tm = max(128, min(1024, (tm // 128) * 128))  # big, 128-aligned tiles
    tm = min(tm, _round_up(M, 8))                # don't tile past the problem
    return max(_round_up(tm, 8), 8)


def token_router(x, weight, bias, *, exact_f32_weights=True, tm=None,
                 vmem_limit_bytes=48 * 1024 * 1024):
    """x: (B, S, D); weight: (1, D) f32; bias: (1,) f32 -> (B, S) in x.dtype."""
    B, S, D = x.shape
    orig_dtype = x.dtype
    M = B * S

    x2 = x.reshape(M, D)                         # metadata reshape; no HBM copy

    compute_dtype = jnp.float32 if exact_f32_weights else orig_dtype
    w = weight.reshape(1, D).astype(compute_dtype)
    b = bias.reshape(1).astype(jnp.float32)

    if tm is None:
        tm = _pick_tile(M, D, jnp.dtype(orig_dtype).itemsize,
                        exact_f32_weights, budget_bytes=24 * 1024 * 1024)
    num_tiles = pl.cdiv(M, tm)

    out = pl.pallas_call(
        _router_kernel,
        out_shape=jax.ShapeDtypeStruct((num_tiles, 1, tm), orig_dtype),
        grid_spec=pltpu.PrefetchScalarGridSpec(
            num_scalar_prefetch=0,
            grid=(num_tiles,),
            in_specs=[
                pl.BlockSpec((tm, D), lambda i: (i, 0)),            # streaming x tile
                pl.BlockSpec((1, D), lambda i: (0, 0)),             # resident weight
                pl.BlockSpec(memory_space=pltpu.MemorySpace.SMEM),  # bias scalar
            ],
            out_specs=pl.BlockSpec((1, 1, tm), lambda i: (i, 0, 0)),
        ),
        compiler_params=pltpu.CompilerParams(
            dimension_semantics=("parallel",),      # v7x: shard grid across 2 TCs
            vmem_limit_bytes=vmem_limit_bytes,
        ),
    )(x2, w, b)

    return out.reshape(num_tiles * tm)[:M].reshape(B, S)


if __name__ == "__main__":
    key = jax.random.PRNGKey(0)
    kx, kw, kb, kx2 = jax.random.split(key, 4)

    # Small shapes implied by TokenRouter.forward: (batch, seq, embed_dim).
    B, S, D = 2, 8, 32
    x = jax.random.normal(kx, (B, S, D), dtype=jnp.bfloat16)

    bound = 1.0 / (D ** 0.5)                     # PyTorch Linear default init range
    weight = jax.random.uniform(kw, (1, D), jnp.float32, -bound, bound)
    bias = jax.random.uniform(kb, (1,), jnp.float32, -bound, bound)

    def ref_fn(xa, wa, ba):
        r = (xa.astype(jnp.float32) @ wa.T.astype(jnp.float32) + ba)[..., 0]
        return r.astype(xa.dtype)

    # Default (PyTorch-faithful) path: x.float() @ W_f32 + b, cast back.
    out = jax.block_until_ready(token_router(x, weight, bias))
    ref = ref_fn(x, weight, bias)
    assert out.shape == (B, S) and out.dtype == x.dtype
    assert jnp.allclose(out.astype(jnp.float32), ref.astype(jnp.float32),
                        atol=1e-2, rtol=1e-2)

    # bf16 fast path (dot in input dtype, f32 accumulation on the MXU).
    out_fast = jax.block_until_ready(
        token_router(x, weight, bias, exact_f32_weights=False))
    assert jnp.allclose(out_fast.astype(jnp.float32), ref.astype(jnp.float32),
                        atol=3e-2, rtol=3e-2)

    # Larger case: multi-tile grid with a partial last block (no padding of x).
    B2, S2, D2 = 2, 1000, 256
    x_big = jax.random.normal(kx2, (B2, S2, D2), dtype=jnp.bfloat16)
    bound2 = 1.0 / (D2 ** 0.5)
    w_big = jax.random.uniform(kw, (1, D2), jnp.float32, -bound2, bound2)
    out_big = jax.block_until_ready(token_router(x_big, w_big, bias))
    ref_big = ref_fn(x_big, w_big, bias)
    assert out_big.shape == (B2, S2) and out_big.dtype == x_big.dtype
    assert jnp.allclose(out_big.astype(jnp.float32), ref_big.astype(jnp.float32),
                        atol=3e-2, rtol=3e-2)

    print("KERNEL_OK")
</pallas_src>

<mosaic_0001>
module attributes {stable_mosaic.version = 11 : i64} {
  func.func @_router_kernel(%arg0: i32, %arg1: memref<16x32xbf16, #tpu.memory_space<vmem>>, %arg2: memref<1x32xf32, #tpu.memory_space<vmem>>, %arg3: memref<1xf32, #tpu.memory_space<smem>>, %arg4: memref<1x1x16xbf16, #tpu.memory_space<vmem>>) attributes {dimension_semantics = [#tpu.dimension_semantics<parallel>], iteration_bounds = array<i64: 1>, scalar_prefetch = 0 : i64, scratch_operands = 0 : i64, tpu.core_type = #tpu.core_type<tc>, window_params = [{transform_indices = @transform_0, window_bounds = array<i64: 16, 32>}, {pipeline_mode = #tpu.pipeline_mode<synchronous>, transform_indices = @transform_1, window_bounds = array<i64: 1, 32>}, {transform_indices = @transform_2, window_bounds = array<i64: 1>}, {transform_indices = @transform_3, window_bounds = array<i64: 1, 1, 16>}]} {
    %c0 = arith.constant 0 : index
    %c0_0 = arith.constant 0 : index
    %0 = vector.load %arg1[%c0, %c0_0] : memref<16x32xbf16, #tpu.memory_space<vmem>>, vector<16x32xbf16>
    %c0_1 = arith.constant 0 : index
    %c0_2 = arith.constant 0 : index
    %1 = vector.load %arg2[%c0_1, %c0_2] : memref<1x32xf32, #tpu.memory_space<vmem>>, vector<1x32xf32>
    %2 = arith.extf %0 : vector<16x32xbf16> to vector<16x32xf32>
    %cst = arith.constant dense<0.000000e+00> : vector<1x16xf32>
    %3 = tpu.matmul %1, %2, %cst {dimension_numbers = #tpu.dot_dimension_numbers<[1], [1], [0], [0], [0, 0, 1, 0], [], []>} : vector<1x32xf32>, vector<16x32xf32>, vector<1x16xf32> -> vector<1x16xf32>
    %c0_3 = arith.constant 0 : index
    %4 = memref.load %arg3[%c0_3] : memref<1xf32, #tpu.memory_space<smem>>
    %5 = vector.broadcast %4 : f32 to vector<1x16xf32>
    %6 = arith.addf %3, %5 : vector<1x16xf32>
    %7 = arith.truncf %6 : vector<1x16xf32> to vector<1x16xbf16>
    %8 = vector.shape_cast %7 : vector<1x16xbf16> to vector<1x1x16xbf16>
    %c0_4 = arith.constant 0 : index
    %c0_5 = arith.constant 0 : index
    %c0_6 = arith.constant 0 : index
    %9 = vector.load %arg4[%c0_4, %c0_5, %c0_6] : memref<1x1x16xbf16, #tpu.memory_space<vmem>>, vector<1x1x16xbf16>
    tpu.vector_store %arg4[%c0_4, %c0_5, %c0_6], %8 {strides = array<i32>} : memref<1x1x16xbf16, #tpu.memory_space<vmem>>, vector<1x1x16xbf16>,
    return
  }
  func.func @transform_0(%arg0: i32) -> (i32, i32) {
    %c0_i32 = arith.constant 0 : i32
    %c0_i32_0 = arith.constant 0 : i32
    return %arg0, %c0_i32 : i32, i32
  }
  func.func @transform_1(%arg0: i32) -> (i32, i32) {
    %c0_i32 = arith.constant 0 : i32
    %c0_i32_0 = arith.constant 0 : i32
    %c0_i32_1 = arith.constant 0 : i32
    return %c0_i32, %c0_i32_0 : i32, i32
  }
  func.func @transform_2(%arg0: i32) -> i32 {
    %c0_i32 = arith.constant 0 : i32
    %c0_i32_0 = arith.constant 0 : i32
    return %c0_i32 : i32
  }
  func.func @transform_3(%arg0: i32) -> (i32, i32, i32) {
    %c0_i32 = arith.constant 0 : i32
    %c0_i32_0 = arith.constant 0 : i32
    %c0_i32_1 = arith.constant 0 : i32
    return %arg0, %c0_i32, %c0_i32_0 : i32, i32, i32
  }
}

</mosaic_0001>

<llo_original>
// kernel: tpu_custom_call.1
$region0: #{tpu_custom_call.1}
  #allocation0 [shape = 'u32[]', space=smem, size = 0x4, offset = 0x4, fixed_abs, tag = 'smem constant byte address 0x4 - core index']
  #allocation1 [shape = 'u32[144,128]{1,0:T(1,128)}', space=vmem, size = 0x12000, scoped, tag = 'internal scratch']
  #allocation2 [shape = 'f32[1]{0:T(128)S(6)}', space=smem, size = 0x200, scoped, tag = 'scoped memory for tpu_custom_call.1']
  %s0 = inlined_call_operand.hbm [shape: bf16[16,32], index: 0, kind: input, shape index: {}]
  %s1 = inlined_call_operand.vmem [shape: f32[1,32], index: 1, kind: input, shape index: {}]
  %s2 = inlined_call_operand.<no memory space> [shape: f32[1], index: 2, kind: input, shape index: {}]
  %s3 = inlined_call_operand.hbm [shape: bf16[1,1,16], index: 3, kind: output, shape index: {}]
  %s4 = sld [smem:[#allocation0]]
  $region26: #{tpu_custom_call.1} parent=0
    _
  %s6 = ssub.s32 1, %s4
  %s7 = scalar_select 0, %s6, %s4
  %8 = sst [smem:[#allocation2]] %s2
  $region1: #{tpu_custom_call.1} parent=0
    #allocation3 [shape = 'u8[4096]{0}', space=vmem, size = 0x1000, scoped, tag = 'input window, operand 0, single buffered']
    #allocation4 [shape = 's32[1]{0}', space=sflag, size = 0x4, scoped, tag = 'scoped memory for tpu_custom_call.1']
    #allocation5 [shape = 's32[1]{0}', space=sflag, size = 0x4, scoped, tag = 'scoped memory for tpu_custom_call.1']
    #allocation6 [shape = 'u8[512]{0}', space=vmem, size = 0x400, scoped, tag = 'output window, operand 0, single buffered']
    %9 = vsyncpa [#allocation4], 0
    %10 = vsyncpa [#allocation5], 0
    // Predicated region
    $region2: #{tpu_custom_call.1} parent=1 // pred_check
      _
    $region3: #{tpu_custom_call.1} parent=1 // pred_check_branch
      %12 = sbr.rel (0) target = $region5
    $region4: #{tpu_custom_call.1} parent=1 // pred_region
      %s14 = ssub.s32 128, 128
      %15 = vsyncadd [#allocation4], %s14
      %s16 = sshll.u32 [#allocation3], 4
      %s17 = int_to_ptr.vmem [resolvable:$true] %s16
      %22 = dma.hbm_to_vmem [thread:$0]  %s0, 128, %s17, [#allocation4], 64, 64, 4
    $region5: #{tpu_custom_call.1} parent=1 // pred_fallthru
      _
    // Predicated region
    $region6: #{tpu_custom_call.1} parent=1 // pred_check
      _
    $region7: #{tpu_custom_call.1} parent=1 // pred_check_branch
      %24 = sbr.rel (0) target = $region9
    $region8: #{tpu_custom_call.1} parent=1 // pred_region
      _
    $region9: #{tpu_custom_call.1} parent=1 // pred_fallthru
      _
    // Predicated region
    $region10: #{tpu_custom_call.1} parent=1 // pred_check
      _
    $region11: #{tpu_custom_call.1} parent=1 // pred_check_branch
      %26 = sbr.rel (0) target = $region13
    $region12: #{tpu_custom_call.1} parent=1 // pred_region
      _
    $region13: #{tpu_custom_call.1} parent=1 // pred_fallthru
      _
    // Predicated region
    $region14: #{tpu_custom_call.1} parent=1 // pred_check
      _
    $region15: #{tpu_custom_call.1} parent=1 // pred_check_branch
      %28 = sbr.rel (0) target = $region17
    $region16: #{tpu_custom_call.1} parent=1 // pred_region
      %29 = dma.done [#allocation4], 128
    $region17: #{tpu_custom_call.1} parent=1 // pred_fallthru
      _
    %v30 = vld [vmem:[#allocation3] sm:$0xf]
    %v31 = vld [vmem:[#allocation3 + $0x4] sm:$0xf]
    %v32 = vld [vmem:[%s1] sm:$0x1]
    %v33 = vunpack.c.l.bf16 %v30
    %v34 = vunpack.c.l.bf16 %v31
    %s35 = sld [smem:[#allocation2]]
    %v36 = vstv %s35
    %vm37 = vcmask 261120
    %v39 = vsel %vm37, %v32, 0
    %v42 = vsel %vm37, %v33, 0
    %v45 = vsel %vm37, %v34, 0
    %47 = vmatprep.subr.mxu0 0.0
    %48 = vmatpush1.xpose.msra.mxu0 0.0
    %49 = vmatprep.subr.mxu0 0.0
    %50 = vmatpush1.xpose.msra.mxu0 0.0
    %51 = vmatprep.subr.mxu0 0.0
    %52 = vmatpush1.xpose.msra.mxu0 0.0
    %53 = vmatprep.subr.mxu0 0.0
    %54 = vmatpush1.xpose.msra.mxu0 0.0
    %55 = vmatprep.subr.mxu0 0.0
    %56 = vmatpush1.xpose.msra.mxu0 0.0
    %57 = vmatprep.subr.mxu0 0.0
    %58 = vmatpush1.xpose.msra.mxu0 0.0
    %59 = vmatprep.subr.mxu0 0.0
    %60 = vmatpush1.xpose.msra.mxu0 0.0
    %61 = vmatprep.subr.mxu0 0.0
    %62 = vmatpush1.xpose.msra.mxu0 0.0
    %63 = vmatprep.subr.mxu0 0.0
    %64 = vmatpush1.xpose.msra.mxu0 0.0
    %65 = vmatprep.subr.mxu0 0.0
    %66 = vmatpush1.xpose.msra.mxu0 0.0
    %67 = vmatprep.subr.mxu0 0.0
    %68 = vmatpush1.xpose.msra.mxu0 0.0
    %69 = vmatprep.subr.mxu0 0.0
    %70 = vmatpush1.xpose.msra.mxu0 0.0
    %71 = vmatprep.subr.mxu0 0.0
    %72 = vmatpush1.xpose.msra.mxu0 0.0
    %73 = vmatprep.subr.mxu0 0.0
    %74 = vmatpush1.xpose.msra.mxu0 0.0
    %75 = vmatprep.subr.mxu0 0.0
    %76 = vmatpush1.xpose.msra.mxu0 %v45
    %77 = vmatprep.subr.mxu0 0.0
    %78 = vmatpush1.xpose.msra.mxu0 %v42
    %79 = vmatprep.subr.mxu0 0.0
    %80 = vmatpush2.xpose.msra.mxu0 0.0
    %81 = vmatprep.subr.mxu0 0.0
    %82 = vmatpush2.xpose.msra.mxu0 0.0
    %83 = vmatprep.subr.mxu0 0.0
    %84 = vmatpush2.xpose.msra.mxu0 0.0
    %85 = vmatprep.subr.mxu0 0.0
    %86 = vmatpush2.xpose.msra.mxu0 0.0
    %87 = vmatprep.subr.mxu0 0.0
    %88 = vmatpush2.xpose.msra.mxu0 0.0
    %89 = vmatprep.subr.mxu0 0.0
    %90 = vmatpush2.xpose.msra.mxu0 0.0
    %91 = vmatprep.subr.mxu0 0.0
    %92 = vmatpush2.xpose.msra.mxu0 0.0
    %93 = vmatprep.subr.mxu0 0.0
    %94 = vmatpush2.xpose.msra.mxu0 0.0
    %95 = vmatprep.subr.mxu0 0.0
    %96 = vmatpush2.xpose.msra.mxu0 0.0
    %97 = vmatprep.subr.mxu0 0.0
    %98 = vmatpush2.xpose.msra.mxu0 0.0
    %99 = vmatprep.subr.mxu0 0.0
    %100 = vmatpush2.xpose.msra.mxu0 0.0
    %101 = vmatprep.subr.mxu0 0.0
    %102 = vmatpush2.xpose.msra.mxu0 0.0
    %103 = vmatprep.subr.mxu0 0.0
    %104 = vmatpush2.xpose.msra.mxu0 0.0
    %105 = vmatprep.subr.mxu0 0.0
    %106 = vmatpush2.xpose.msra.mxu0 0.0
    %107 = vmatprep.subr.mxu0 0.0
    %108 = vmatpush2.xpose.msra.mxu0 0.0
    %109 = vmatprep.subr.mxu0 0.0
    %110 = vmatpush2.xpose.msra.mxu0 0.0
    %111 = vmatprep.mubr.f32.mxu0 0.0
    %112 = vmatmul.mubr.f32.gmra.mxu0 %v39
    %v113 = vpop.f32.mrf.mxu0
    %v114 = vadd.f32 %v36, %v113
    %v115 = vpop.f32.mrf.mxu0
    %116 = vdwg.mxu0
    %v117 = vpack.c.bf16 %v114, %v114
    %vm118 = vcmask 122880
    %vm119 = vsmask.f32 256
    %vm120 = vmand %vm118, %vm119
    %v121 = vld [vmem:[#allocation6] sm:$0x1]
    %v122 = vsel %vm120, %v117, %v121
    %123 = vst [vmem:[#allocation6] sm:$0x1] %v122
    // Predicated region
    $region18: #{tpu_custom_call.1} parent=1 // pred_check
      _
    $region19: #{tpu_custom_call.1} parent=1 // pred_check_branch
      %125 = sbr.rel (0) target = $region21
    $region20: #{tpu_custom_call.1} parent=1 // pred_region
      %s127 = ssub.s32 16, 16
      %128 = vsyncadd [#allocation5], %s127
      %s130 = sshll.u32 [#allocation6], 4
      %s131 = int_to_ptr.vmem [resolvable:$true] %s130
      %133 = dma.vmem_to_hbm [thread:$0]  %s131, 16, %s3, [#allocation5]
    $region21: #{tpu_custom_call.1} parent=1 // pred_fallthru
      _
    // Predicated region
    $region22: #{tpu_custom_call.1} parent=1 // pred_check
      _
    $region23: #{tpu_custom_call.1} parent=1 // pred_check_branch
      %135 = sbr.rel (0) target = $region25
    $region24: #{tpu_custom_call.1} parent=1 // pred_region
      %136 = dma.done [#allocation5], 16
    $region25: #{tpu_custom_call.1} parent=1 // pred_fallthru
      _
    %137 = vsyncpa [#allocation4], 1
    %138 = vsyncpa [#allocation5], 1

</llo_original>
